<compile_context>
chip_gen: v7x
topology: tpu7x:2x2x1
jax: 0.10.0
libtpu: 0.0.40
codegen_flags: <defaults>
</compile_context>

<pallas_src>
import functools
import math

import jax
import jax.numpy as jnp
from jax.experimental import pallas as pl
from jax.experimental.pallas import tpu as pltpu


def _concat_conv1d_kernel(x_ref, w_ref, b_ref, o_ref, *, ksize):
    # x_ref: (C_in, Nb*L)      channel-major flattened batch block
    # w_ref: (C_out, K*C_in)   taps flattened along the contraction (tap-major)
    # b_ref: (C_out, 1)        bias with the constant time channel folded in
    # o_ref: (1, C_out, W)     W = Nb*L - (K-1); lane-dense output slab
    w_cols = o_ref.shape[-1]
    xb = x_ref[...]
    # Fused im2col: slab row k*C_in + c, column m  ->  xb[c, m + k].
    slab = jnp.concatenate([xb[:, k:k + w_cols] for k in range(ksize)], axis=0)
    acc = jnp.dot(w_ref[...], slab, preferred_element_type=jnp.float32)
    o_ref[0] = (acc + b_ref[...]).astype(o_ref.dtype)


def concat_conv1d(t, x, weight, bias, *, target_lanes=512):
    """t: scalar, x: (N, C_in, L), weight: (C_out, C_in+1, K), bias: (C_out,)."""
    N, C_in, L = x.shape
    C_out, C_in1, K = weight.shape
    assert C_in1 == C_in + 1
    L_out = L - K + 1                        # stride=1, padding=0, dilation=1
    dtype = x.dtype

    # ---- fold the constant time channel into the bias (exact math) -------
    t32 = jnp.asarray(t, dtype=jnp.float32)
    bias_eff = bias.astype(jnp.float32) + t32 * weight[:, 0, :].astype(jnp.float32).sum(-1)
    b2 = bias_eff.reshape(C_out, 1)

    # ---- flatten the remaining taps for one fused matmul ------------------
    # w2[o, k*C_in + c] = weight[o, c + 1, k]   (matches slab row order)
    w2 = jnp.transpose(weight[:, 1:, :], (0, 2, 1)).reshape(C_out, K * C_in).astype(dtype)

    # ---- choose a lane-dense batch block -----------------------------------
    nb_want = max(1, pl.cdiv(target_lanes, L))
    if N <= nb_want:
        Nb = N                               # single block: full-dim block is always legal
    else:
        nb_base = 128 // math.gcd(L, 128)    # keep Nb*L a multiple of 128 when tiling
        Nb = nb_base * pl.cdiv(nb_want, nb_base)
    N_pad = Nb * pl.cdiv(N, Nb)
    G = N_pad // Nb
    W = Nb * L - (K - 1)                     # per-block matmul / store lane width

    # channel-major, batch folded into the lane axis (wrapper-side layout plumbing)
    x_t = jnp.transpose(x, (1, 0, 2))        # (C_in, N, L)
    if N_pad != N:
        x_t = jnp.pad(x_t, ((0, 0), (0, N_pad - N), (0, 0)))
    x_flat = x_t.reshape(C_in, N_pad * L)    # (C_in, N_pad*L)

    kernel = functools.partial(_concat_conv1d_kernel, ksize=K)

    out = pl.pallas_call(
        kernel,
        out_shape=jax.ShapeDtypeStruct((G, C_out, W), dtype),
        grid=(G,),
        in_specs=[
            pl.BlockSpec((C_in, Nb * L), lambda g: (0, g)),       # x batch block
            pl.BlockSpec((C_out, K * C_in), lambda g: (0, 0)),    # fused weight (invariant)
            pl.BlockSpec((C_out, 1), lambda g: (0, 0)),           # folded bias (invariant)
        ],
        out_specs=pl.BlockSpec((1, C_out, W), lambda g: (g, 0, 0)),
        compiler_params=pltpu.CompilerParams(
            dimension_semantics=("parallel",)),
    )(x_flat, w2, b2)

    # (G, C_out, W) -> (N, C_out, L_out): pad back to Nb*L columns, drop the
    # (K-1) invalid tail positions of every batch row, restore NCL layout.
    out = jnp.pad(out, ((0, 0), (0, 0), (0, K - 1)))              # (G, C_out, Nb*L)
    out = out.reshape(G, C_out, Nb, L)[..., :L_out]               # (G, C_out, Nb, L_out)
    out = out.transpose(0, 2, 1, 3).reshape(N_pad, C_out, L_out)
    return out[:N]


if __name__ == "__main__":
    # Small shapes consistent with ConcatConv1d(dim_in, dim_out, ksize=3)
    N, dim_in, dim_out, L, K = 2, 4, 8, 16, 3

    key = jax.random.PRNGKey(0)
    kx, kw, kb = jax.random.split(key, 3)

    x = jax.random.normal(kx, (N, dim_in, L), dtype=jnp.float32)
    t = jnp.float32(0.5)

    # Deterministic Conv1d-style init: uniform(-bound, bound), bound = 1/sqrt(fan_in*K)
    fan_in = (dim_in + 1) * K
    bound = 1.0 / jnp.sqrt(jnp.float32(fan_in))
    weight = jax.random.uniform(kw, (dim_out, dim_in + 1, K),
                                dtype=jnp.float32, minval=-bound, maxval=bound)
    bias = jax.random.uniform(kb, (dim_out,),
                              dtype=jnp.float32, minval=-bound, maxval=bound)

    conv = jax.jit(concat_conv1d)
    out = jax.block_until_ready(conv(t, x, weight, bias))

    # Pure-JAX reference (same semantics as the PyTorch module)
    tt = jnp.ones_like(x[:, :1, :]) * t
    ttx = jnp.concatenate([tt, x], axis=1)
    ref = jax.lax.conv_general_dilated(
        ttx, weight, window_strides=(1,), padding="VALID",
        dimension_numbers=("NCH", "OIH", "NCH")) + bias[None, :, None]

    assert out.shape == (N, dim_out, L - K + 1)
    assert jnp.allclose(out, ref, atol=1e-5, rtol=1e-5)
    print("KERNEL_OK")
</pallas_src>

<mosaic_0001>
module attributes {stable_mosaic.version = 11 : i64} {
  func.func @_concat_conv1d_kernel(%arg0: i32, %arg1: memref<4x32xf32, #tpu.memory_space<vmem>>, %arg2: memref<8x12xf32, #tpu.memory_space<vmem>>, %arg3: memref<8x1xf32, #tpu.memory_space<vmem>>, %arg4: memref<1x8x30xf32, #tpu.memory_space<vmem>>) attributes {dimension_semantics = [#tpu.dimension_semantics<parallel>], iteration_bounds = array<i64: 1>, scalar_prefetch = 0 : i64, scratch_operands = 0 : i64, tpu.core_type = #tpu.core_type<tc>, window_params = [{transform_indices = @transform_0, window_bounds = array<i64: 4, 32>}, {pipeline_mode = #tpu.pipeline_mode<synchronous>, transform_indices = @transform_1, window_bounds = array<i64: 8, 12>}, {pipeline_mode = #tpu.pipeline_mode<synchronous>, transform_indices = @transform_2, window_bounds = array<i64: 8, 1>}, {transform_indices = @transform_3, window_bounds = array<i64: 1, 8, 30>}]} {
    %c0 = arith.constant 0 : index
    %c0_0 = arith.constant 0 : index
    %0 = vector.load %arg1[%c0, %c0_0] : memref<4x32xf32, #tpu.memory_space<vmem>>, vector<4x32xf32>
    %1 = vector.extract_strided_slice %0 {offsets = [0, 0], sizes = [4, 30], strides = [1, 1]} : vector<4x32xf32> to vector<4x30xf32>
    %2 = vector.extract_strided_slice %0 {offsets = [0, 1], sizes = [4, 30], strides = [1, 1]} : vector<4x32xf32> to vector<4x30xf32>
    %3 = vector.extract_strided_slice %0 {offsets = [0, 2], sizes = [4, 30], strides = [1, 1]} : vector<4x32xf32> to vector<4x30xf32>
    %4 = tpu.concatenate %1, %2, %3 in 0 : vector<4x30xf32>, vector<4x30xf32>, vector<4x30xf32> -> vector<12x30xf32>
    %c0_1 = arith.constant 0 : index
    %c0_2 = arith.constant 0 : index
    %5 = vector.load %arg2[%c0_1, %c0_2] : memref<8x12xf32, #tpu.memory_space<vmem>>, vector<8x12xf32>
    %cst = arith.constant dense<0.000000e+00> : vector<8x30xf32>
    %6 = tpu.matmul %5, %4, %cst {dimension_numbers = #tpu.dot_dimension_numbers<[1], [0], [0], [1], [0, 0, 1, 1], [], []>} : vector<8x12xf32>, vector<12x30xf32>, vector<8x30xf32> -> vector<8x30xf32>
    %c0_3 = arith.constant 0 : index
    %c0_4 = arith.constant 0 : index
    %7 = vector.load %arg3[%c0_3, %c0_4] : memref<8x1xf32, #tpu.memory_space<vmem>>, vector<8x1xf32>
    %8 = vector.broadcast %7 : vector<8x1xf32> to vector<8x30xf32>
    %9 = arith.addf %6, %8 : vector<8x30xf32>
    %c0_5 = arith.constant 0 : index
    %c0_6 = arith.constant 0 : index
    %c0_7 = arith.constant 0 : index
    %10 = vector.load %arg4[%c0_5, %c0_6, %c0_7] : memref<1x8x30xf32, #tpu.memory_space<vmem>>, vector<1x8x30xf32>
    %11 = vector.shape_cast %10 : vector<1x8x30xf32> to vector<8x30xf32>
    %12 = vector.shape_cast %9 : vector<8x30xf32> to vector<1x8x30xf32>
    tpu.vector_store %arg4[%c0_5, %c0_6, %c0_7], %12 {strides = array<i32>} : memref<1x8x30xf32, #tpu.memory_space<vmem>>, vector<1x8x30xf32>,
    return
  }
  func.func @transform_0(%arg0: i32) -> (i32, i32) {
    %c0_i32 = arith.constant 0 : i32
    %c0_i32_0 = arith.constant 0 : i32
    return %c0_i32, %arg0 : i32, i32
  }
  func.func @transform_1(%arg0: i32) -> (i32, i32) {
    %c0_i32 = arith.constant 0 : i32
    %c0_i32_0 = arith.constant 0 : i32
    %c0_i32_1 = arith.constant 0 : i32
    return %c0_i32, %c0_i32_0 : i32, i32
  }
  func.func @transform_2(%arg0: i32) -> (i32, i32) {
    %c0_i32 = arith.constant 0 : i32
    %c0_i32_0 = arith.constant 0 : i32
    %c0_i32_1 = arith.constant 0 : i32
    return %c0_i32, %c0_i32_0 : i32, i32
  }
  func.func @transform_3(%arg0: i32) -> (i32, i32, i32) {
    %c0_i32 = arith.constant 0 : i32
    %c0_i32_0 = arith.constant 0 : i32
    %c0_i32_1 = arith.constant 0 : i32
    return %arg0, %c0_i32, %c0_i32_0 : i32, i32, i32
  }
}

</mosaic_0001>

<llo_original>
// kernel: concat_conv1d.1
$region0: #{concat_conv1d.1}
  #allocation0 [shape = 'u32[]', space=smem, size = 0x4, offset = 0x4, fixed_abs, tag = 'smem constant byte address 0x4 - core index']
  #allocation1 [shape = 'u32[144,128]{1,0:T(1,128)}', space=vmem, size = 0x12000, scoped, tag = 'internal scratch']
  %s0 = inlined_call_operand.vmem [shape: f32[4,32], index: 0, kind: input, shape index: {}]
  %s1 = inlined_call_operand.vmem [shape: f32[8,12], index: 1, kind: input, shape index: {}]
  %s2 = inlined_call_operand.vmem [shape: f32[8,1], index: 2, kind: input, shape index: {}]
  %s3 = inlined_call_operand.vmem [shape: f32[1,8,30], index: 3, kind: output, shape index: {}]
  %s4 = sld [smem:[#allocation0]]
  $region22: #{concat_conv1d.1} parent=0
    _
  %s6 = ssub.s32 1, %s4
  %s7 = scalar_select 0, %s6, %s4
  // Predicated region
  $region2: #{concat_conv1d.1} parent=0 // pred_check
    _
  $region3: #{concat_conv1d.1} parent=0 // pred_check_branch
    %9 = sbr.rel (0) target = $region5
  $region4: #{concat_conv1d.1} parent=0 // pred_region
    _
  $region5: #{concat_conv1d.1} parent=0 // pred_fallthru
    _
  // Predicated region
  $region6: #{concat_conv1d.1} parent=0 // pred_check
    _
  $region7: #{concat_conv1d.1} parent=0 // pred_check_branch
    %11 = sbr.rel (0) target = $region9
  $region8: #{concat_conv1d.1} parent=0 // pred_region
    _
  $region9: #{concat_conv1d.1} parent=0 // pred_fallthru
    _
  // Predicated region
  $region10: #{concat_conv1d.1} parent=0 // pred_check
    _
  $region11: #{concat_conv1d.1} parent=0 // pred_check_branch
    %13 = sbr.rel (0) target = $region13
  $region12: #{concat_conv1d.1} parent=0 // pred_region
    _
  $region13: #{concat_conv1d.1} parent=0 // pred_fallthru
    _
  %v14 = vld [vmem:[%s0] sm:$0xf]
  %v16 = vrot.slane %v14, 4
  %17 = vrot.lane.b32.xlu0 %v16, 127
  %v18 = vpop.permute.xlu0 %17
  %20 = vrot.lane.b32.xlu0 %v14, 126
  %v21 = vpop.permute.xlu0 %20
  %vm22 = vcmask 1043456
  %v23 = vsel %vm22, %v14, %v18
  %v24 = vld [vmem:[%s1] sm:$0xff]
  %v25 = vld [vmem:[%s2] sm:$0xff]
  %27 = vset.pattern.permute.xlu0 0
  %28 = vperm.xlu0 %27, %v25
  %v29 = vpop.permute.xlu0 %28
  %vm31 = vcmask 97280
  %v33 = vsel %vm31, %v24, 0
  %v35 = vsel %vm22, %v21, 0
  %37 = vmatprep.subr.mxu0 0.0
  %38 = vmatpush1.msra.mxu0 %v23
  %39 = vmatprep.subr.mxu0 0.0
  %40 = vmatpush1.msra.mxu0 %v35
  %41 = vmatprep.subr.mxu0 0.0
  %42 = vmatpush1.msra.mxu0 0.0
  %43 = vmatprep.subr.mxu0 0.0
  %44 = vmatpush1.msra.mxu0 0.0
  %45 = vmatprep.subr.mxu0 0.0
  %46 = vmatpush1.msra.mxu0 0.0
  %47 = vmatprep.subr.mxu0 0.0
  %48 = vmatpush1.msra.mxu0 0.0
  %49 = vmatprep.subr.mxu0 0.0
  %50 = vmatpush1.msra.mxu0 0.0
  %51 = vmatprep.subr.mxu0 0.0
  %52 = vmatpush1.msra.mxu0 0.0
  %53 = vmatprep.subr.mxu0 0.0
  %54 = vmatpush1.msra.mxu0 0.0
  %55 = vmatprep.subr.mxu0 0.0
  %56 = vmatpush1.msra.mxu0 0.0
  %57 = vmatprep.subr.mxu0 0.0
  %58 = vmatpush1.msra.mxu0 0.0
  %59 = vmatprep.subr.mxu0 0.0
  %60 = vmatpush1.msra.mxu0 0.0
  %61 = vmatprep.subr.mxu0 0.0
  %62 = vmatpush1.msra.mxu0 0.0
  %63 = vmatprep.subr.mxu0 0.0
  %64 = vmatpush1.msra.mxu0 0.0
  %65 = vmatprep.subr.mxu0 0.0
  %66 = vmatpush1.msra.mxu0 0.0
  %67 = vmatprep.subr.mxu0 0.0
  %68 = vmatpush1.msra.mxu0 0.0
  %69 = vmatprep.subr.mxu0 0.0
  %70 = vmatpush1.msra.mxu0 0.0
  %71 = vmatprep.subr.mxu0 0.0
  %72 = vmatpush1.msra.mxu0 0.0
  %73 = vmatprep.subr.mxu0 0.0
  %74 = vmatpush1.msra.mxu0 0.0
  %75 = vmatprep.subr.mxu0 0.0
  %76 = vmatpush1.msra.mxu0 0.0
  %77 = vmatprep.subr.mxu0 0.0
  %78 = vmatpush1.msra.mxu0 0.0
  %79 = vmatprep.subr.mxu0 0.0
  %80 = vmatpush1.msra.mxu0 0.0
  %81 = vmatprep.subr.mxu0 0.0
  %82 = vmatpush1.msra.mxu0 0.0
  %83 = vmatprep.subr.mxu0 0.0
  %84 = vmatpush1.msra.mxu0 0.0
  %85 = vmatprep.subr.mxu0 0.0
  %86 = vmatpush1.msra.mxu0 0.0
  %87 = vmatprep.subr.mxu0 0.0
  %88 = vmatpush1.msra.mxu0 0.0
  %89 = vmatprep.subr.mxu0 0.0
  %90 = vmatpush1.msra.mxu0 0.0
  %91 = vmatprep.subr.mxu0 0.0
  %92 = vmatpush1.msra.mxu0 0.0
  %93 = vmatprep.subr.mxu0 0.0
  %94 = vmatpush1.msra.mxu0 0.0
  %95 = vmatprep.subr.mxu0 0.0
  %96 = vmatpush1.msra.mxu0 0.0
  %97 = vmatprep.subr.mxu0 0.0
  %98 = vmatpush1.msra.mxu0 0.0
  %99 = vmatprep.subr.mxu0 0.0
  %100 = vmatpush1.msra.mxu0 0.0
  %101 = vmatprep.mubr.f32.mxu0 0.0
  %102 = vmatmul.mubr.f32.gmra.mrb[0].mxu0 %v33
  %v103 = vpop.f32.mrb[0].mxu0
  %v104 = vadd.f32 %v29, %v103
  %v105 = vpop.f32.mrb[0].mxu0
  %106 = vdwg.mxu0
  %vm107 = vcmask 244736
  %108 = vst.msk [vmem:[%s3] sm:$0xff] %vm107, %v104
  // Predicated region
  $region14: #{concat_conv1d.1} parent=0 // pred_check
    _
  $region15: #{concat_conv1d.1} parent=0 // pred_check_branch
    %110 = sbr.rel (0) target = $region17
  $region16: #{concat_conv1d.1} parent=0 // pred_region
    _
  $region17: #{concat_conv1d.1} parent=0 // pred_fallthru
    _
  // Predicated region
  $region18: #{concat_conv1d.1} parent=0 // pred_check
    _
  $region19: #{concat_conv1d.1} parent=0 // pred_check_branch
    %112 = sbr.rel (0) target = $region21
  $region20: #{concat_conv1d.1} parent=0 // pred_region
    _
  $region21: #{concat_conv1d.1} parent=0 // pred_fallthru
    _

</llo_original>
